<compile_context>
chip_gen: v7x
topology: tpu7x:2x2x1
jax: 0.10.0
libtpu: 0.0.40
codegen_flags: <defaults>
</compile_context>

<pallas_src>
import itertools

import jax
import jax.numpy as jnp
from jax.experimental import pallas as pl
from jax.experimental.pallas import tpu as pltpu


# ----------------------------------------------------------------------------
# Kernel 1: 1x1-conv "model" head  --  (nc, Cin) @ (Cin, TN) + bias
# ----------------------------------------------------------------------------
def _head_kernel(w_ref, b_ref, x_ref, o_ref):
    o_ref[...] = (
        jnp.dot(w_ref[...], x_ref[...], preferred_element_type=jnp.float32)
        + b_ref[...]
    )


def _pick_lane_tile(n, max_tile=4096):
    """Largest multiple-of-128 divisor of n that is <= max_tile (or n itself)."""
    if n <= max_tile:
        return n
    best = None
    for t in range(128, max_tile + 1, 128):
        if n % t == 0:
            best = t
    return best if best is not None else n


def conv1x1_head(x_nchw, weight, bias):
    """x: (B, Cin, H, W) NCHW  ->  logits (B, nc, H, W).  No HBM transposes."""
    B, Cin, H, W = x_nchw.shape
    nc = weight.shape[1]
    N = H * W
    tn = _pick_lane_tile(N)
    # Contiguous reshape only (metadata / bitcast in XLA), NOT a transpose.
    x2 = x_nchw.reshape(B, Cin, N)
    out2 = pl.pallas_call(
        _head_kernel,
        out_shape=jax.ShapeDtypeStruct((B, nc, N), jnp.float32),
        grid_spec=pltpu.PrefetchScalarGridSpec(
            num_scalar_prefetch=0,
            grid=(B, N // tn),
            in_specs=[
                pl.BlockSpec((nc, Cin), lambda b, t: (0, 0)),
                pl.BlockSpec((nc, 1), lambda b, t: (0, 0)),
                pl.BlockSpec((None, Cin, tn), lambda b, t: (b, 0, t)),
            ],
            out_specs=pl.BlockSpec((None, nc, tn), lambda b, t: (b, 0, t)),
        ),
        compiler_params=pltpu.CompilerParams(
            dimension_semantics=("parallel", "parallel")),
        cost_estimate=pl.CostEstimate(
            flops=2 * B * N * Cin * nc,
            transcendentals=0,
            bytes_accessed=4 * (B * Cin * N + B * nc * N + Cin * nc + nc)),
    )(weight.T, bias.reshape(nc, 1), x2)
    return out2.reshape(B, nc, H, W)


# ----------------------------------------------------------------------------
# Kernel 2: fused physics regularizer
#   softmax -> class-pair relu -> ConstantPad2d(1,1) -> opening + selective
#   dilation -> L1 norms, all in one program over the whole batch.
# ----------------------------------------------------------------------------
def _make_physics_kernel(batch, num_classes, iterations, Hp, Wp):
    pairs = list(itertools.permutations(range(num_classes), 2))
    C = 2 * len(pairs)           # channels of final_concatenated
    BC = batch * C

    def kernel(lup_ref, o_open_ref, o_dil_ref):
        one = jnp.float32(1.0)

        # Border mask computed ONCE at the pooling shape (JAX doesn't CSE
        # broadcast_in_dim, so hoist it out of the pooling / iteration loops).
        row = jax.lax.broadcasted_iota(jnp.int32, (BC, Hp, Wp), 1)
        col = jax.lax.broadcasted_iota(jnp.int32, (BC, Hp, Wp), 2)
        border = (row == 0) | (row == Hp - 1) | (col == 0) | (col == Wp - 1)

        # ---- softmax over the class axis (purely per-pixel, so computing it
        # on the padded spatial domain is exact on the interior; the border is
        # overwritten with the ConstantPad2d(1,1) value below) ----------------
        lu = lup_ref[...]                                   # (B, nc, Hp, Wp)
        m = jnp.max(lu, axis=1, keepdims=True)
        e = jnp.exp(lu - m)
        probs = e / jnp.sum(e, axis=1, keepdims=True)

        # ---- class-pair construction: relu(cat([p_i, p_j]) - mean) ----------
        chans = []
        for (i, j) in pairs:
            d = (probs[:, i] - probs[:, j]) * jnp.float32(0.5)
            chans.append(jnp.maximum(d, 0.0))               # relu(p_i - mean)
            chans.append(jnp.maximum(-d, 0.0))              # relu(p_j - mean)
        fc = jnp.stack(chans, axis=1).reshape(BC, Hp, Wp)
        # ConstantPad2d(1, 1)(final_concatenated): interior = fc, border = 1.
        x0 = jnp.where(border, one, fc)

        def pool3x3_pad1(x, is_avg):
            """3x3 stride-1 'valid' pool + ConstantPad2d(1, 1).

            Max/avg of 9 rolled copies; roll wraparound only contaminates the
            1-wide border, which is overwritten with 1.0.
            """
            acc = None
            for di in (-1, 0, 1):
                sh_h = (-di) % Hp
                xr = x if sh_h == 0 else pltpu.roll(x, shift=sh_h, axis=1)
                for dj in (-1, 0, 1):
                    sh_w = (-dj) % Wp
                    r = xr if sh_w == 0 else pltpu.roll(xr, shift=sh_w, axis=2)
                    if acc is None:
                        acc = r
                    elif is_avg:
                        acc = acc + r
                    else:
                        acc = jnp.maximum(acc, r)
            if is_avg:
                acc = acc * jnp.float32(1.0 / 9.0)
            return jnp.where(border, one, acc)

        def l2_normalize(v):
            # F.normalize(dim=1, eps=1e-12): per-batch over the C channels.
            # rsqrt runs on the EUP slot, off the VALU critical path.
            v4 = v.reshape(batch, C, Hp, Wp)
            ss = jnp.sum(v4 * v4, axis=1, keepdims=True)
            inv = jax.lax.rsqrt(jnp.maximum(ss, jnp.float32(1e-24)))
            return (v4 * inv).reshape(BC, Hp, Wp)

        relu0 = x0

        # ---- opening (maxpool) and selective-dilation (avgpool) branches ----
        x_open = x0
        x_dil = x0
        # TODO(synk): switch to lax.fori_loop(..., unroll=True) if T grows
        # past ~4 to bound live ranges / vreg pressure.
        for _ in range(iterations):
            x1m = pool3x3_pad1(x_open, is_avg=False)        # maxpool + pad
            x1a = pool3x3_pad1(x_dil, is_avg=True)          # avgpool + pad
            # TODO(synk): concatenating [x1m; x1a] along rows would share the
            # relu0 RHS in a single MXU pass (half the RHS pushes, 2x M), but
            # needs an unaligned (Hp=18) sublane concat; kept as two batched
            # matmuls for guaranteed lowering.
            x_open = jnp.einsum("cij,cjk->cik", x1m, relu0,
                                preferred_element_type=jnp.float32)
            x2 = jnp.einsum("cij,cjk->cik", x1a, relu0,
                            preferred_element_type=jnp.float32)
            # _rectification: torch.mean over dim=2 == the H axis.
            offset = x2 - x_dil
            offset_mean = jnp.mean(offset, axis=1, keepdims=True)
            x_dil = x_dil + jnp.maximum(offset - offset_mean, 0.0)

        # TODO(synk): the PyTorch reference matmuls the padded "operated"
        # tensor against the UNPADDED negated original, which does not
        # type-check; we use ConstantPad2d(1, 1)(-original), built in-register.
        other_open = jnp.where(border, one, -x0)
        y_open = jnp.einsum("cij,cjk->cik", l2_normalize(x_open), other_open,
                            preferred_element_type=jnp.float32)
        y_dil = jnp.einsum("cij,cjk->cik", l2_normalize(x_dil), x0,
                           preferred_element_type=jnp.float32)
        l1_open = jnp.sum(jnp.abs(other_open - y_open))     # torch.norm(., p=1)
        l1_dil = jnp.sum(jnp.abs(x0 - y_dil))

        o_open_ref[...] = jnp.broadcast_to(l1_open, (1, 1))
        o_dil_ref[...] = jnp.broadcast_to(l1_dil, (1, 1))

    return kernel, C


def physics_regularizer(logits_up, num_classes, iterations):
    """Fused softmax + class-pair build + opening/dilation L1 regularizers.

    logits_up: (B, nc, Ht, Wt) upscaled pre-softmax logits.
    Returns (norm_opened, norm_dilated) scalars.
    """
    B, nc, Ht, Wt = logits_up.shape
    Hp, Wp = Ht + 2, Wt + 2
    # Pad the small nc-channel logits (not the 2*nc*(nc-1)-channel
    # final_concatenated, which never touches HBM anymore).  Softmax and the
    # per-pixel class-pair ops commute with spatial padding, and the kernel
    # rewrites the border with the ConstantPad2d(1,1) value.
    lu_pad = jnp.pad(logits_up, ((0, 0), (0, 0), (1, 1), (1, 1)))

    kernel, C = _make_physics_kernel(B, num_classes, iterations, Hp, Wp)
    BC = B * C
    mm_flops = (2 * iterations + 2) * BC * 2 * Hp * Hp * Wp
    pool_flops = 2 * iterations * 9 * BC * Hp * Wp
    out_open, out_dil = pl.pallas_call(
        kernel,
        out_shape=(jax.ShapeDtypeStruct((1, 1), jnp.float32),
                   jax.ShapeDtypeStruct((1, 1), jnp.float32)),
        grid_spec=pltpu.PrefetchScalarGridSpec(
            num_scalar_prefetch=0,
            # Whole batch in one program: per-batch work is far below the
            # fixed grid-step overhead.
            # TODO(synk): on v7x (2 TensorCores) a 2-way CORE_PARALLEL split
            # over B would be worthwhile once B is large.
            grid=(1,),
            in_specs=[pl.BlockSpec((B, nc, Hp, Wp), lambda i: (0, 0, 0, 0))],
            out_specs=[pl.BlockSpec((1, 1), lambda i: (0, 0)),
                       pl.BlockSpec((1, 1), lambda i: (0, 0))],
        ),
        compiler_params=pltpu.CompilerParams(
            dimension_semantics=("arbitrary",)),
        cost_estimate=pl.CostEstimate(
            flops=mm_flops + pool_flops + 16 * BC * Hp * Wp,
            transcendentals=B * nc * Hp * Wp + 2 * B * Hp * Wp,
            bytes_accessed=4 * (B * nc * Hp * Wp + 2)),
    )(lu_pad)
    return out_open[0, 0], out_dil[0, 0]


# ----------------------------------------------------------------------------
# PhysicsFormer wrapper (model + loss + physics regularizer)
# ----------------------------------------------------------------------------
class PhysicsFormerPallas:
    def __init__(self, in_channels, num_classes, iterations=2,
                 image_size=(16, 16), seed=0):
        self.num_classes = num_classes
        self.T = iterations
        self.image_size = image_size
        k1, k2 = jax.random.split(jax.random.PRNGKey(seed))
        # deterministic synthetic "model": a 1x1 conv head
        self.head_w = 0.1 * jax.random.normal(
            k1, (in_channels, num_classes), jnp.float32)
        self.head_b = 0.1 * jax.random.normal(
            k2, (num_classes,), jnp.float32)

    def model(self, x):
        return conv1x1_head(x, self.head_w, self.head_b)

    def loss_fn(self, logits, labels):
        return jnp.mean((logits - labels) ** 2)

    def __call__(self, inputs, labels):
        # FullModel.forward
        logits = self.model(inputs)
        loss = self.loss_fn(logits, labels)[None]            # torch.unsqueeze

        # PhysicsFormer.forward
        B, nc, _, _ = logits.shape
        Ht, Wt = self.image_size
        # TODO(synk): reference uses undefined self.align_corners; bilinear
        # resize here follows align_corners=False semantics.
        logits_up = jax.image.resize(logits, (B, nc, Ht, Wt), method="bilinear")

        # softmax + class-pair construction + pad + both regularizer branches
        # are fused into a single Pallas kernel (no HBM materialization of
        # probs / final_concatenated / its pad).
        norm_opened, norm_dilated = physics_regularizer(
            logits_up, self.num_classes, self.T)

        final_norm = jnp.abs(norm_opened - norm_dilated)
        final_loss = final_norm + loss
        return final_loss, logits


if __name__ == "__main__":
    key = jax.random.PRNGKey(0)
    kx, kl = jax.random.split(key)
    B, Cin, h, w = 2, 4, 8, 8
    num_classes = 3
    x = jax.random.normal(kx, (B, Cin, h, w), jnp.float32)
    labels = jax.random.normal(kl, (B, num_classes, h, w), jnp.float32)

    model = PhysicsFormerPallas(in_channels=Cin, num_classes=num_classes,
                                iterations=2, image_size=(16, 16))
    final_loss, logits = model(x, labels)
    jax.block_until_ready((final_loss, logits))
    print("KERNEL_OK")
</pallas_src>

<mosaic_0001>
module attributes {stable_mosaic.version = 11 : i64} {
  func.func @_head_kernel(%arg0: i32, %arg1: i32, %arg2: memref<3x4xf32, #tpu.memory_space<vmem>>, %arg3: memref<3x1xf32, #tpu.memory_space<vmem>>, %arg4: memref<1x4x64xf32, #tpu.memory_space<vmem>>, %arg5: memref<1x3x64xf32, #tpu.memory_space<vmem>>) attributes {dimension_semantics = [#tpu.dimension_semantics<parallel>, #tpu.dimension_semantics<parallel>], iteration_bounds = array<i64: 2, 1>, scalar_prefetch = 0 : i64, scratch_operands = 0 : i64, tpu.core_type = #tpu.core_type<tc>, window_params = [{pipeline_mode = #tpu.pipeline_mode<synchronous>, transform_indices = @transform_0, window_bounds = array<i64: 3, 4>}, {pipeline_mode = #tpu.pipeline_mode<synchronous>, transform_indices = @transform_1, window_bounds = array<i64: 3, 1>}, {transform_indices = @transform_2, window_bounds = array<i64: 1, 4, 64>}, {transform_indices = @transform_3, window_bounds = array<i64: 1, 3, 64>}]} {
    %c0 = arith.constant 0 : index
    %c0_0 = arith.constant 0 : index
    %0 = vector.load %arg2[%c0, %c0_0] : memref<3x4xf32, #tpu.memory_space<vmem>>, vector<3x4xf32>
    %c0_1 = arith.constant 0 : index
    %c0_2 = arith.constant 0 : index
    %c0_3 = arith.constant 0 : index
    %1 = vector.load %arg4[%c0_1, %c0_2, %c0_3] : memref<1x4x64xf32, #tpu.memory_space<vmem>>, vector<1x4x64xf32>
    %2 = vector.shape_cast %1 : vector<1x4x64xf32> to vector<4x64xf32>
    %cst = arith.constant dense<0.000000e+00> : vector<3x64xf32>
    %3 = tpu.matmul %0, %2, %cst {dimension_numbers = #tpu.dot_dimension_numbers<[1], [0], [0], [1], [0, 0, 1, 1], [], []>} : vector<3x4xf32>, vector<4x64xf32>, vector<3x64xf32> -> vector<3x64xf32>
    %c0_4 = arith.constant 0 : index
    %c0_5 = arith.constant 0 : index
    %4 = vector.load %arg3[%c0_4, %c0_5] : memref<3x1xf32, #tpu.memory_space<vmem>>, vector<3x1xf32>
    %5 = vector.broadcast %4 : vector<3x1xf32> to vector<3x64xf32>
    %6 = arith.addf %3, %5 : vector<3x64xf32>
    %c0_6 = arith.constant 0 : index
    %c0_7 = arith.constant 0 : index
    %c0_8 = arith.constant 0 : index
    %7 = vector.load %arg5[%c0_6, %c0_7, %c0_8] : memref<1x3x64xf32, #tpu.memory_space<vmem>>, vector<1x3x64xf32>
    %8 = vector.shape_cast %7 : vector<1x3x64xf32> to vector<3x64xf32>
    %9 = vector.shape_cast %6 : vector<3x64xf32> to vector<1x3x64xf32>
    tpu.vector_store %arg5[%c0_6, %c0_7, %c0_8], %9 {strides = array<i32>} : memref<1x3x64xf32, #tpu.memory_space<vmem>>, vector<1x3x64xf32>,
    return
  }
  func.func @transform_0(%arg0: i32, %arg1: i32) -> (i32, i32) {
    %c0_i32 = arith.constant 0 : i32
    %c0_i32_0 = arith.constant 0 : i32
    %c0_i32_1 = arith.constant 0 : i32
    return %c0_i32, %c0_i32_0 : i32, i32
  }
  func.func @transform_1(%arg0: i32, %arg1: i32) -> (i32, i32) {
    %c0_i32 = arith.constant 0 : i32
    %c0_i32_0 = arith.constant 0 : i32
    %c0_i32_1 = arith.constant 0 : i32
    return %c0_i32, %c0_i32_0 : i32, i32
  }
  func.func @transform_2(%arg0: i32, %arg1: i32) -> (i32, i32, i32) {
    %c0_i32 = arith.constant 0 : i32
    %c0_i32_0 = arith.constant 0 : i32
    return %arg0, %c0_i32, %arg1 : i32, i32, i32
  }
  func.func @transform_3(%arg0: i32, %arg1: i32) -> (i32, i32, i32) {
    %c0_i32 = arith.constant 0 : i32
    %c0_i32_0 = arith.constant 0 : i32
    return %arg0, %c0_i32, %arg1 : i32, i32, i32
  }
}

</mosaic_0001>

<llo_original>
// kernel: tpu_custom_call.1
$region0: #{tpu_custom_call.1}
  #allocation0 [shape = 'u32[]', space=smem, size = 0x4, offset = 0x4, fixed_abs, tag = 'smem constant byte address 0x4 - core index']
  #allocation1 [shape = 'u32[144,128]{1,0:T(1,128)}', space=vmem, size = 0x12000, scoped, tag = 'internal scratch']
  %s0 = inlined_call_operand.vmem [shape: f32[3,4], index: 0, kind: input, shape index: {}]
  %s1 = inlined_call_operand.vmem [shape: f32[3,1], index: 1, kind: input, shape index: {}]
  %s2 = inlined_call_operand.vmem [shape: f32[2,4,64], index: 2, kind: input, shape index: {}]
  %s3 = inlined_call_operand.vmem [shape: f32[2,3,64], index: 3, kind: output, shape index: {}]
  %s4 = sld [smem:[#allocation0]]
  $region45: #{tpu_custom_call.1} parent=0
    _
  %s6 = ssub.s32 1, %s4
  %s7 = scalar_select 0, %s6, %s4
  loop: start=0, step=1, limit=4
  $region2: #{tpu_custom_call.1} parent=0 // loop_pre_header
    _
  $region3: #{tpu_custom_call.1} parent=0 // loop_header
    %s9 = sphi 0, %s13
    %p10 = scmp.ge.s32.totalorder %s9, 4
    %s16 = sphi 0, %s28
    %s17 = sphi 0, %s24
    %s18 = sphi 0, %s16
    %s19 = sphi 0, %s17
    %s20 = sphi 0, %s18
    %s21 = sphi 0, %s19
    %s29 = sphi 0, %s29
    %s31 = sphi 0, %s29
    %s32 = sphi 0, %s31
    %s46 = sphi 0, %s32
    %s50 = sphi 0, %s50
    %s52 = sphi 0, %s50
    %s53 = sphi 0, %s52
    %s67 = sphi 0, %s53
    %s75 = sphi 0, %s77
    %s78 = sphi 0, %s75
    %s79 = sphi 0, %s78
    %s95 = sphi 0, %s79
    %s103 = sphi 0, %s105
    %s106 = sphi 0, %s103
    %s107 = sphi 0, %s106
    %s123 = sphi 0, %s107
  $region4: #{tpu_custom_call.1} parent=0 // loop_header_branch
    %12 = sbr.rel (%p10) target = $region8
  $region5: #{tpu_custom_call.1} parent=0 // loop_body
    %s14 = ssub.s32 %s9, 1
    %s15 = ssub.s32 %s9, 2
    %s22 = sadd.s32 1, %s17
    %p23 = scmp.ge.s32.totalorder %s22, 1
    %s24 = scalar_select %p23, 0, %s22
    %s25 = sadd.s32 1, %s16
    %s26 = scalar_select %p23, %s25, %s16
    %p27 = scmp.ge.s32.totalorder %s26, 2
    %s28 = scalar_select %p27, 0, %s26
    %s30 = sadd.s32 %s29, 1
    %p33 = scmp.eq.s32.totalorder %s9, 1
    %p34 = scmp.ne.s32.totalorder %s29, %s31
    %p35 = scmp.eq.s32.totalorder %s9, 0
    %p36 = por %p34, %p35
    %p37 = scmp.ne.s32.totalorder %s29, %s31
    %p38 = scmp.eq.s32.totalorder %s14, 1
    %p39 = por %p37, %p38
    %p40 = scmp.ne.s32.totalorder %s31, %s32
    %p41 = scmp.eq.s32.totalorder %s14, 0
    %p42 = por %p40, %p41
    %p43 = scmp.ne.s32.totalorder %s31, %s32
    %p44 = scmp.eq.s32.totalorder %s15, 1
    %p45 = por %p43, %p44
    %p47 = scmp.ne.s32.totalorder %s32, %s46
    %p48 = scmp.eq.s32.totalorder %s15, 0
    %p49 = por %p47, %p48
    %s51 = sadd.s32 %s50, 1
    %p54 = scmp.eq.s32.totalorder %s9, 1
    %p55 = scmp.ne.s32.totalorder %s50, %s52
    %p56 = scmp.eq.s32.totalorder %s9, 0
    %p57 = por %p55, %p56
    %p58 = scmp.ne.s32.totalorder %s50, %s52
    %p59 = scmp.eq.s32.totalorder %s14, 1
    %p60 = por %p58, %p59
    %p61 = scmp.ne.s32.totalorder %s52, %s53
    %p62 = scmp.eq.s32.totalorder %s14, 0
    %p63 = por %p61, %p62
    %p64 = scmp.ne.s32.totalorder %s52, %s53
    %p65 = scmp.eq.s32.totalorder %s15, 1
    %p66 = por %p64, %p65
    %p68 = scmp.ne.s32.totalorder %s53, %s67
    %p69 = scmp.eq.s32.totalorder %s15, 0
    %p70 = por %p68, %p69
    %s71 = ssub.s32 %s16, %s28
    %s72 = ssub.s32 %s17, %s24
    %s73 = sor.u32 %s71, %s72
    %p74 = scmp.eq.s32.totalorder %s73, 0
    %s76 = sadd.s32 %s75, 1
    %s77 = scalar_select %p74, %s75, %s76
    %p80 = pneg %p74
    %p81 = scmp.eq.s32.totalorder %s9, 1
    %p82 = por %p80, %p81
    %p83 = scmp.ne.s32.totalorder %s75, %s78
    %p84 = scmp.eq.s32.totalorder %s9, 0
    %p85 = por %p83, %p84
    %p86 = scmp.ne.s32.totalorder %s75, %s78
    %p87 = scmp.eq.s32.totalorder %s14, 1
    %p88 = por %p86, %p87
    %p89 = scmp.ne.s32.totalorder %s78, %s79
    %p90 = scmp.eq.s32.totalorder %s14, 0
    %p91 = por %p89, %p90
    %p92 = scmp.ne.s32.totalorder %s78, %s79
    %p93 = scmp.eq.s32.totalorder %s15, 1
    %p94 = por %p92, %p93
    %p96 = scmp.ne.s32.totalorder %s79, %s95
    %p97 = scmp.eq.s32.totalorder %s15, 0
    %p98 = por %p96, %p97
    %s99 = ssub.s32 %s16, %s28
    %s100 = ssub.s32 %s17, %s24
    %s101 = sor.u32 %s99, %s100
    %p102 = scmp.eq.s32.totalorder %s101, 0
    %s104 = sadd.s32 %s103, 1
    %s105 = scalar_select %p102, %s103, %s104
    %p108 = pneg %p102
    %p109 = scmp.eq.s32.totalorder %s9, 1
    %p110 = por %p108, %p109
    %p111 = scmp.ne.s32.totalorder %s103, %s106
    %p112 = scmp.eq.s32.totalorder %s9, 0
    %p113 = por %p111, %p112
    %p114 = scmp.ne.s32.totalorder %s103, %s106
    %p115 = scmp.eq.s32.totalorder %s14, 1
    %p116 = por %p114, %p115
    %p117 = scmp.ne.s32.totalorder %s106, %s107
    %p118 = scmp.eq.s32.totalorder %s14, 0
    %p119 = por %p117, %p118
    %p120 = scmp.ne.s32.totalorder %s106, %s107
    %p121 = scmp.eq.s32.totalorder %s15, 1
    %p122 = por %p120, %p121
    %p124 = scmp.ne.s32.totalorder %s107, %s123
    %p125 = scmp.eq.s32.totalorder %s15, 0
    %p126 = por %p124, %p125
    %p127 = scmp.le.s32.totalorder 1, %s9
    %p128 = scmp.lt.s32.totalorder %s9, 3
    %p129 = pnand %p127, %p128
    %p130 = pneg %p129
    // Predicated region
    $region9: #{tpu_custom_call.1} parent=5 // pred_check
      _
    $region10: #{tpu_custom_call.1} parent=5 // pred_check_branch
      %132 = sbr.rel (%p129) target = $region12
    $region11: #{tpu_custom_call.1} parent=5 // pred_region
      %s133 = ssub.s32 %s9, 1
      // Predicated region
      $region13: #{tpu_custom_call.1} parent=11 // pred_check
        %p134 = pneg %p42
      $region14: #{tpu_custom_call.1} parent=11 // pred_check_branch
        %136 = sbr.rel (%p134) target = $region16
      $region15: #{tpu_custom_call.1} parent=11 // pred_region
        _
      $region16: #{tpu_custom_call.1} parent=11 // pred_fallthru
        _
      // Predicated region
      $region17: #{tpu_custom_call.1} parent=11 // pred_check
        %p137 = pneg %p63
      $region18: #{tpu_custom_call.1} parent=11 // pred_check_branch
        %139 = sbr.rel (%p137) target = $region20
      $region19: #{tpu_custom_call.1} parent=11 // pred_region
        _
      $region20: #{tpu_custom_call.1} parent=11 // pred_fallthru
        _
    $region12: #{tpu_custom_call.1} parent=5 // pred_fallthru
      _
    %p140 = scmp.lt.s32.totalorder %s9, 2
    // Predicated region
    $region21: #{tpu_custom_call.1} parent=5 // pred_check
      %p141 = pneg %p140
    $region22: #{tpu_custom_call.1} parent=5 // pred_check_branch
      %143 = sbr.rel (%p141) target = $region24
    $region23: #{tpu_custom_call.1} parent=5 // pred_region
      // Predicated region
      $region25: #{tpu_custom_call.1} parent=23 // pred_check
        %p144 = pneg %p85
      $region26: #{tpu_custom_call.1} parent=23 // pred_check_branch
        %146 = sbr.rel (%p144) target = $region28
      $region27: #{tpu_custom_call.1} parent=23 // pred_region
        %p147 = scmp.lt.s32.totalorder %s16, 1
        %s148 = scalar_select %p147, %s16, 1
        %p149 = scmp.lt.s32.totalorder %s17, 0
        %s150 = scalar_select %p149, %s17, 0
        %s151 = sadd.s32 %s150, %s148
        %s152 = smul.addr %s151, 4
        %s153 = scalar_lea.vmem %s2, %s152
      $region28: #{tpu_custom_call.1} parent=23 // pred_fallthru
        _
    $region24: #{tpu_custom_call.1} parent=5 // pred_fallthru
      _
    %p154 = scmp.le.s32.totalorder 1, %s9
    %p155 = scmp.lt.s32.totalorder %s9, 3
    %p156 = pnand %p154, %p155
    %p157 = pneg %p156
    // Predicated region
    $region29: #{tpu_custom_call.1} parent=5 // pred_check
      _
    $region30: #{tpu_custom_call.1} parent=5 // pred_check_branch
      %159 = sbr.rel (%p156) target = $region32
    $region31: #{tpu_custom_call.1} parent=5 // pred_region
      %s160 = ssub.s32 %s9, 1
      %p161 = pneg %p42
      %p162 = pneg %p39
      %p163 = pneg %p63
      %p164 = pneg %p60
      %p165 = scmp.lt.s32.totalorder %s18, 1
      %s166 = scalar_select %p165, %s18, 1
      %p167 = scmp.lt.s32.totalorder %s19, 0
      %s168 = scalar_select %p167, %s19, 0
      %s169 = sadd.s32 %s168, %s166
      %s170 = smul.addr %s169, 4
      %s171 = scalar_lea.vmem %s2, %s170
      %p172 = pneg %p91
      %p173 = pneg %p88
      %p174 = pneg %p119
      %p175 = pneg %p116
      %p176 = scmp.lt.s32.totalorder %s18, 1
      %s177 = scalar_select %p176, %s18, 1
      %p178 = scmp.lt.s32.totalorder %s19, 0
      %s179 = scalar_select %p178, %s19, 0
      %s180 = sadd.s32 %s179, %s177
      %s181 = smul.addr %s180, 4
      %s182 = scalar_lea.vmem %s3, %s181
      %p183 = scmp.lt.s32.totalorder %s18, 1
      %s184 = scalar_select %p183, %s18, 1
      %p185 = scmp.lt.s32.totalorder %s19, 0
      %s186 = scalar_select %p185, %s19, 0
      %s187 = sadd.s32 %s186, %s184
      %s188 = smul.addr %s187, 4
      %s189 = scalar_lea.vmem %s2, %s188
      %p190 = scmp.lt.s32.totalorder %s18, 1
      %s191 = scalar_select %p190, %s18, 1
      %p192 = scmp.lt.s32.totalorder %s19, 0
      %s193 = scalar_select %p192, %s19, 0
      %s194 = sadd.s32 %s193, %s191
      %s195 = smul.addr %s194, 4
      %s196 = scalar_lea.vmem %s3, %s195
      %v197 = vld [vmem:[%s0] sm:$0x7]
      %v198 = vld [vmem:[%s189] sm:$0xf]
      %v199 = vld [vmem:[%s1] sm:$0x7]
      %201 = vset.pattern.permute.xlu0 0
      %202 = vperm.xlu0 %201, %v199
      %v203 = vpop.permute.xlu0 %202
      %vm205 = vcmask 31744
      %v207 = vsel %vm205, %v197, 0
      %vm209 = vcmask 1043456
      %v211 = vsel %vm209, %v198, 0
      %213 = vmatprep.subr.mxu0 0.0
      %214 = vmatpush1.msra.mxu0 %v211
      %215 = vmatprep.subr.mxu0 0.0
      %216 = vmatpush1.msra.mxu0 0.0
      %217 = vmatprep.subr.mxu0 0.0
      %218 = vmatpush1.msra.mxu0 0.0
      %219 = vmatprep.subr.mxu0 0.0
      %220 = vmatpush1.msra.mxu0 0.0
      %221 = vmatprep.subr.mxu0 0.0
      %222 = vmatpush1.msra.mxu0 0.0
      %223 = vmatprep.subr.mxu0 0.0
      %224 = vmatpush1.msra.mxu0 0.0
      %225 = vmatprep.subr.mxu0 0.0
      %226 = vmatpush1.msra.mxu0 0.0
      %227 = vmatprep.subr.mxu0 0.0
      %228 = vmatpush1.msra.mxu0 0.0
      %229 = vmatprep.subr.mxu0 0.0
      %230 = vmatpush1.msra.mxu0 0.0
      %231 = vmatprep.subr.mxu0 0.0
      %232 = vmatpush1.msra.mxu0 0.0
      %233 = vmatprep.subr.mxu0 0.0
      %234 = vmatpush1.msra.mxu0 0.0
      %235 = vmatprep.subr.mxu0 0.0
      %236 = vmatpush1.msra.mxu0 0.0
      %237 = vmatprep.subr.mxu0 0.0
      %238 = vmatpush1.msra.mxu0 0.0
      %239 = vmatprep.subr.mxu0 0.0
      %240 = vmatpush1.msra.mxu0 0.0
      %241 = vmatprep.subr.mxu0 0.0
      %242 = vmatpush1.msra.mxu0 0.0
      %243 = vmatprep.subr.mxu0 0.0
      %244 = vmatpush1.msra.mxu0 0.0
      %245 = vmatprep.subr.mxu0 0.0
      %246 = vmatpush1.msra.mxu0 0.0
      %247 = vmatprep.subr.mxu0 0.0
      %248 = vmatpush1.msra.mxu0 0.0
      %249 = vmatprep.subr.mxu0 0.0
      %250 = vmatpush1.msra.mxu0 0.0
      %251 = vmatprep.subr.mxu0 0.0
      %252 = vmatpush1.msra.mxu0 0.0
      %253 = vmatprep.subr.mxu0 0.0
      %254 = vmatpush1.msra.mxu0 0.0
      %255 = vmatprep.subr.mxu0 0.0
      %256 = vmatpush1.msra.mxu0 0.0
      %257 = vmatprep.subr.mxu0 0.0
      %258 = vmatpush1.msra.mxu0 0.0
      %259 = vmatprep.subr.mxu0 0.0
      %260 = vmatpush1.msra.mxu0 0.0
      %261 = vmatprep.subr.mxu0 0.0
      %262 = vmatpush1.msra.mxu0 0.0
      %263 = vmatprep.subr.mxu0 0.0
      %264 = vmatpush1.msra.mxu0 0.0
      %265 = vmatprep.subr.mxu0 0.0
      %266 = vmatpush1.msra.mxu0 0.0
      %267 = vmatprep.subr.mxu0 0.0
      %268 = vmatpush1.msra.mxu0 0.0
      %269 = vmatprep.subr.mxu0 0.0
      %270 = vmatpush1.msra.mxu0 0.0
      %271 = vmatprep.subr.mxu0 0.0
      %272 = vmatpush1.msra.mxu0 0.0
      %273 = vmatprep.subr.mxu0 0.0
      %274 = vmatpush1.msra.mxu0 0.0
      %275 = vmatprep.subr.mxu0 0.0
      %276 = vmatpush1.msra.mxu0 0.0
      %277 = vmatprep.mubr.f32.mxu0 0.0
      %278 = vmatmul.mubr.f32.gmra.mrb[0].mxu0 %v207
      %v279 = vpop.f32.mrb[0].mxu0
      %v280 = vadd.f32 %v203, %v279
      %v281 = vpop.f32.mrb[0].mxu0
      %282 = vdwg.mxu0
      %vm283 = vcmask 518144
      %284 = vst.msk [vmem:[%s196] sm:$0x7] %vm283, %v280
      %p285 = scmp.lt.s32.totalorder %s18, 1
      %s286 = scalar_select %p285, %s18, 1
      %p287 = scmp.lt.s32.totalorder %s19, 0
      %s288 = scalar_select %p287, %s19, 0
      %s289 = sadd.s32 %s288, %s286
      %s290 = smul.addr %s289, 4
      %s291 = scalar_lea.vmem %s3, %s290
      // Predicated region
      $region33: #{tpu_custom_call.1} parent=31 // pred_check
        %p292 = pneg %p116
      $region34: #{tpu_custom_call.1} parent=31 // pred_check_branch
        %294 = sbr.rel (%p292) target = $region36
      $region35: #{tpu_custom_call.1} parent=31 // pred_region
        _
      $region36: #{tpu_custom_call.1} parent=31 // pred_fallthru
        _
    $region32: #{tpu_custom_call.1} parent=5 // pred_fallthru
      _
    %p295 = scmp.le.s32.totalorder 2, %s9
    // Predicated region
    $region37: #{tpu_custom_call.1} parent=5 // pred_check
      %p296 = pneg %p295
    $region38: #{tpu_custom_call.1} parent=5 // pred_check_branch
      %298 = sbr.rel (%p296) target = $region40
    $region39: #{tpu_custom_call.1} parent=5 // pred_region
      %s299 = ssub.s32 %s9, 2
      // Predicated region
      $region41: #{tpu_custom_call.1} parent=39 // pred_check
        %p300 = pneg %p122
      $region42: #{tpu_custom_call.1} parent=39 // pred_check_branch
        %302 = sbr.rel (%p300) target = $region44
      $region43: #{tpu_custom_call.1} parent=39 // pred_region
        %p303 = scmp.lt.s32.totalorder %s20, 1
        %s304 = scalar_select %p303, %s20, 1
        %p305 = scmp.lt.s32.totalorder %s21, 0
        %s306 = scalar_select %p305, %s21, 0
        %s307 = sadd.s32 %s306, %s304
        %s308 = smul.addr %s307, 4
        %s309 = scalar_lea.vmem %s3, %s308
      $region44: #{tpu_custom_call.1} parent=39 // pred_fallthru
        _
    $region40: #{tpu_custom_call.1} parent=5 // pred_fallthru
      _
  $region6: #{tpu_custom_call.1} parent=0 // loop_footer
    %s13 = sadd.s32 1, %s9
  $region7: #{tpu_custom_call.1} parent=0 // loop_footer_branch
    %8 = sbr.rel target = $region3
  $region8: #{tpu_custom_call.1} parent=0 // loop_exit
    _

</llo_original>
